<compile_context>
chip_gen: v6e
topology: v6e:2x2x1
jax: 0.10.0
libtpu: 0.0.40
codegen_flags: <defaults>
</compile_context>

<pallas_src>
import functools

import jax
import jax.numpy as jnp
from jax import lax
from jax.experimental import pallas as pl
from jax.experimental.pallas import tpu as pltpu


# ----------------------------- Pallas kernel --------------------------------

def _linear_kernel(x_ref, w_ref, b_ref, o_ref, acc_ref, *, apply_relu):
    """out = (relu?)(x @ w + b), accumulated over the K grid axis in f32."""
    k = pl.program_id(1)

    @pl.when(k == 0)
    def _():
        acc_ref[...] = jnp.zeros_like(acc_ref)

    acc_ref[...] += jnp.dot(x_ref[...], w_ref[...],
                            preferred_element_type=jnp.float32)

    @pl.when(k == pl.num_programs(1) - 1)
    def _():
        out = acc_ref[...] + b_ref[...]
        if apply_relu:
            out = jnp.maximum(out, 0.0)
        o_ref[...] = out.astype(o_ref.dtype)


# ------------------------------- wrapper -------------------------------------

def _round_up(x, m):
    return (x + m - 1) // m * m


def _pick_tile(dim, candidates):
    for c in candidates:
        if c <= dim and dim % c == 0:
            return c
    return dim


def linear_bias_act(x, w, b, *, apply_relu):
    """x: (M, K) f32, w: (K, N) f32, b: (N,) f32 -> (M, N) f32."""
    M, K = x.shape
    Kw, N = w.shape
    assert K == Kw

    # Pad to TPU-friendly shapes: sublane-aligned M, lane-dense K and N.
    Mp = _round_up(max(M, 8), 8)
    Kp = _round_up(K, 128)
    Np = _round_up(N, 128)

    xp = jnp.zeros((Mp, Kp), jnp.bfloat16).at[:M, :K].set(x.astype(jnp.bfloat16))
    wp = jnp.zeros((Kp, Np), jnp.bfloat16).at[:K, :N].set(w.astype(jnp.bfloat16))
    bp = jnp.zeros((1, Np), jnp.float32).at[0, :N].set(b.astype(jnp.float32))

    tm = _pick_tile(Mp, (512, 256, 128, 64, 32, 16, 8))
    tk = _pick_tile(Kp, (1024, 512, 256, 128))

    kernel = functools.partial(_linear_kernel, apply_relu=apply_relu)
    out = pl.pallas_call(
        kernel,
        out_shape=jax.ShapeDtypeStruct((Mp, Np), jnp.float32),
        grid=(Mp // tm, Kp // tk),
        in_specs=[
            pl.BlockSpec((tm, tk), lambda i, k: (i, k)),
            pl.BlockSpec((tk, Np), lambda i, k: (k, 0)),
            pl.BlockSpec((1, Np), lambda i, k: (0, 0)),
        ],
        out_specs=pl.BlockSpec((tm, Np), lambda i, k: (i, 0)),
        scratch_shapes=[pltpu.VMEM((tm, Np), jnp.float32)],
        compiler_params=pltpu.CompilerParams(
            dimension_semantics=("parallel", "arbitrary"),
            vmem_limit_bytes=64 * 1024 * 1024),
    )(xp, wp, bp)
    return out[:M, :N]


# ------------------------------ MLP forward -----------------------------------

def mlp_pallas(x, params):
    """Matches MLP.forward: returns (out, emb, features)."""
    B = x.shape[0]
    xf = x.reshape(B, -1).astype(jnp.float32)
    # layer1 + ReLU (fused)
    emb = linear_bias_act(xf, params["w1"].T, params["b1"], apply_relu=True)
    # features = [emb.view(B, -1, 1, 1)]
    features = [emb.reshape(B, -1, 1, 1)]
    # layer2
    out = linear_bias_act(emb, params["w2"].T, params["b2"], apply_relu=False)
    return out, emb, features


# --------------------------- pure-JAX reference --------------------------------

def mlp_ref(x, params):
    B = x.shape[0]
    xf = x.reshape(B, -1).astype(jnp.float32)
    emb = jax.nn.relu(
        jnp.dot(xf, params["w1"].T, precision=lax.Precision.HIGHEST)
        + params["b1"])
    out = (jnp.dot(emb, params["w2"].T, precision=lax.Precision.HIGHEST)
           + params["b2"])
    return out, emb, [emb.reshape(B, -1, 1, 1)]


# ------------------------------ params init ------------------------------------

def init_params(key, flat_size, embedding_size, num_classes):
    k1, k2, k3, k4 = jax.random.split(key, 4)
    bound1 = 1.0 / jnp.sqrt(flat_size)
    bound2 = 1.0 / jnp.sqrt(embedding_size)
    return {
        "w1": jax.random.uniform(k1, (embedding_size, flat_size), jnp.float32,
                                 -bound1, bound1),
        "b1": jax.random.uniform(k2, (embedding_size,), jnp.float32,
                                 -bound1, bound1),
        "w2": jax.random.uniform(k3, (num_classes, embedding_size), jnp.float32,
                                 -bound2, bound2),
        "b2": jax.random.uniform(k4, (num_classes,), jnp.float32,
                                 -bound2, bound2),
    }


# ---------------------------------- main ----------------------------------------

if __name__ == "__main__":
    key = jax.random.PRNGKey(0)
    kp, kx = jax.random.split(key)

    B, C, H, W = 2, 3, 32, 32
    embedding_size, num_classes = 256, 10
    flat_size = C * H * W

    params = init_params(kp, flat_size, embedding_size, num_classes)
    x = jax.random.normal(kx, (B, C, H, W), jnp.float32)

    out, emb, feats = mlp_pallas(x, params)
    out = jax.block_until_ready(out)
    emb = jax.block_until_ready(emb)
    feats = [jax.block_until_ready(f) for f in feats]

    out_r, emb_r, feats_r = mlp_ref(x, params)

    ok = True
    checks = [("out", out, out_r), ("emb", emb, emb_r),
              ("features[0]", feats[0], feats_r[0])]
    for name, a, b in checks:
        if a.shape != b.shape:
            ok = False
            print(f"{name}: shape mismatch {a.shape} vs {b.shape}")
            continue
        err = float(jnp.max(jnp.abs(a - b)))
        # bf16 MXU path vs f32/HIGHEST reference -> allow small numerical slack
        tol = 2e-2 + 2e-2 * float(jnp.max(jnp.abs(b)))
        if err > tol:
            ok = False
            print(f"{name}: max abs err {err} (tol {tol})")

    if ok:
        print("KERNEL_OK")
</pallas_src>

<mosaic_0001>
module attributes {stable_mosaic.version = 11 : i64} {
  func.func @_linear_kernel(%arg0: i32, %arg1: i32, %arg2: memref<8x1024xbf16, #tpu.memory_space<vmem>>, %arg3: memref<1024x256xbf16, #tpu.memory_space<vmem>>, %arg4: memref<1x256xf32, #tpu.memory_space<vmem>>, %arg5: memref<8x256xf32, #tpu.memory_space<vmem>>, %arg6: memref<8x256xf32, #tpu.memory_space<vmem>>) attributes {dimension_semantics = [#tpu.dimension_semantics<parallel>, #tpu.dimension_semantics<arbitrary>], iteration_bounds = array<i64: 1, 3>, scalar_prefetch = 0 : i64, scratch_operands = 1 : i64, tpu.core_type = #tpu.core_type<tc>, window_params = [{transform_indices = @transform_0, window_bounds = array<i64: 8, 1024>}, {transform_indices = @transform_1, window_bounds = array<i64: 1024, 256>}, {pipeline_mode = #tpu.pipeline_mode<synchronous>, transform_indices = @transform_2, window_bounds = array<i64: 1, 256>}, {transform_indices = @transform_3, window_bounds = array<i64: 8, 256>}]} {
    %c0_i32 = arith.constant 0 : i32
    %0 = arith.cmpi eq, %arg1, %c0_i32 : i32
    %1 = arith.extui %0 : i1 to i32
    %c0_i32_0 = arith.constant 0 : i32
    %2 = arith.cmpi ne, %1, %c0_i32_0 : i32
    scf.if %2 {
      %cst_9 = arith.constant 0.000000e+00 : f32
      %12 = vector.broadcast %cst_9 : f32 to vector<8x256xf32>
      %c0_10 = arith.constant 0 : index
      %c0_11 = arith.constant 0 : index
      %13 = vector.load %arg6[%c0_10, %c0_11] : memref<8x256xf32, #tpu.memory_space<vmem>>, vector<8x256xf32>
      tpu.vector_store %arg6[%c0_10, %c0_11], %12 {strides = array<i32>} : memref<8x256xf32, #tpu.memory_space<vmem>>, vector<8x256xf32>,
    } else {
    }
    %c0 = arith.constant 0 : index
    %c0_1 = arith.constant 0 : index
    %3 = vector.load %arg6[%c0, %c0_1] : memref<8x256xf32, #tpu.memory_space<vmem>>, vector<8x256xf32>
    %c0_2 = arith.constant 0 : index
    %c0_3 = arith.constant 0 : index
    %4 = vector.load %arg2[%c0_2, %c0_3] : memref<8x1024xbf16, #tpu.memory_space<vmem>>, vector<8x1024xbf16>
    %c0_4 = arith.constant 0 : index
    %c0_5 = arith.constant 0 : index
    %5 = vector.load %arg3[%c0_4, %c0_5] : memref<1024x256xbf16, #tpu.memory_space<vmem>>, vector<1024x256xbf16>
    %cst = arith.constant dense<0.000000e+00> : vector<8x256xf32>
    %6 = tpu.matmul %4, %5, %cst {dimension_numbers = #tpu.dot_dimension_numbers<[1], [0], [0], [1], [0, 0, 1, 1], [], []>} : vector<8x1024xbf16>, vector<1024x256xbf16>, vector<8x256xf32> -> vector<8x256xf32>
    %7 = arith.addf %3, %6 : vector<8x256xf32>
    %c0_6 = arith.constant 0 : index
    %c0_7 = arith.constant 0 : index
    %8 = vector.load %arg6[%c0_6, %c0_7] : memref<8x256xf32, #tpu.memory_space<vmem>>, vector<8x256xf32>
    tpu.vector_store %arg6[%c0_6, %c0_7], %7 {strides = array<i32>} : memref<8x256xf32, #tpu.memory_space<vmem>>, vector<8x256xf32>,
    %c2_i32 = arith.constant 2 : i32
    %9 = arith.cmpi eq, %arg1, %c2_i32 : i32
    %10 = arith.extui %9 : i1 to i32
    %c0_i32_8 = arith.constant 0 : i32
    %11 = arith.cmpi ne, %10, %c0_i32_8 : i32
    scf.if %11 {
      %c0_9 = arith.constant 0 : index
      %c0_10 = arith.constant 0 : index
      %12 = vector.load %arg6[%c0_9, %c0_10] : memref<8x256xf32, #tpu.memory_space<vmem>>, vector<8x256xf32>
      %c0_11 = arith.constant 0 : index
      %c0_12 = arith.constant 0 : index
      %13 = vector.load %arg4[%c0_11, %c0_12] : memref<1x256xf32, #tpu.memory_space<vmem>>, vector<1x256xf32>
      %14 = vector.broadcast %13 : vector<1x256xf32> to vector<8x256xf32>
      %15 = arith.addf %12, %14 : vector<8x256xf32>
      %cst_13 = arith.constant 0.000000e+00 : f32
      %16 = vector.broadcast %cst_13 : f32 to vector<8x256xf32>
      %17 = arith.maximumf %15, %16 : vector<8x256xf32>
      %c0_14 = arith.constant 0 : index
      %c0_15 = arith.constant 0 : index
      %18 = vector.load %arg5[%c0_14, %c0_15] : memref<8x256xf32, #tpu.memory_space<vmem>>, vector<8x256xf32>
      tpu.vector_store %arg5[%c0_14, %c0_15], %17 {strides = array<i32>} : memref<8x256xf32, #tpu.memory_space<vmem>>, vector<8x256xf32>,
    } else {
    }
    return
  }
  func.func @transform_0(%arg0: i32, %arg1: i32) -> (i32, i32) {
    %c0_i32 = arith.constant 0 : i32
    return %arg0, %arg1 : i32, i32
  }
  func.func @transform_1(%arg0: i32, %arg1: i32) -> (i32, i32) {
    %c0_i32 = arith.constant 0 : i32
    %c0_i32_0 = arith.constant 0 : i32
    return %arg1, %c0_i32 : i32, i32
  }
  func.func @transform_2(%arg0: i32, %arg1: i32) -> (i32, i32) {
    %c0_i32 = arith.constant 0 : i32
    %c0_i32_0 = arith.constant 0 : i32
    %c0_i32_1 = arith.constant 0 : i32
    return %c0_i32, %c0_i32_0 : i32, i32
  }
  func.func @transform_3(%arg0: i32, %arg1: i32) -> (i32, i32) {
    %c0_i32 = arith.constant 0 : i32
    %c0_i32_0 = arith.constant 0 : i32
    return %arg0, %c0_i32 : i32, i32
  }
}

</mosaic_0001>

<llo_original>
// kernel: tpu_custom_call.1
$region0: #{tpu_custom_call.1}
  #allocation0 [shape = 'u32[]', space=smem, size = 0x4, offset = 0x4, fixed_abs, tag = 'smem constant byte address 0x4 - core index']
  #allocation1 [shape = 'u32[144,128]{1,0:T(1,128)}', space=vmem, size = 0x12000, scoped, tag = 'internal scratch']
  #allocation2 [shape = 'f32[8,256]{1,0:T(8,128)}', space=vmem, size = 0x2000, scoped, tag = 'scratch operand']
  %s0 = inlined_call_operand.hbm [shape: bf16[8,3072], index: 0, kind: input, shape index: {}]
  %s1 = inlined_call_operand.hbm [shape: bf16[3072,256], index: 1, kind: input, shape index: {}]
  %s2 = inlined_call_operand.hbm [shape: f32[1,256], index: 2, kind: input, shape index: {}]
  %s3 = inlined_call_operand.hbm [shape: f32[8,256], index: 3, kind: output, shape index: {}]
  %s4 = sld [smem:[#allocation0]]
  $region65: #{tpu_custom_call.1} parent=0
    _
  %s6 = ssub.s32 1, %s4
  %s7 = scalar_select 0, %s6, %s4
  $region1: #{tpu_custom_call.1} parent=0
    #allocation3 [shape = 'u8[32768]{0}', space=vmem, size = 0x8000, scoped, tag = 'input window, operand 0']
    #allocation4 [shape = 's32[2]{0}', space=sflag, size = 0x8, scoped, tag = 'scoped memory for tpu_custom_call.1']
    #allocation5 [shape = 's32[2]{0}', space=sflag, size = 0x8, scoped, tag = 'scoped memory for tpu_custom_call.1']
    #allocation6 [shape = 'u8[1048576]{0}', space=vmem, size = 0x100000, scoped, tag = 'input window, operand 1']
    #allocation7 [shape = 's32[2]{0}', space=sflag, size = 0x8, scoped, tag = 'scoped memory for tpu_custom_call.1']
    #allocation8 [shape = 'u8[1024]{0}', space=vmem, size = 0x400, scoped, tag = 'input window, operand 2, single buffered']
    #allocation9 [shape = 'u8[8192]{0}', space=vmem, size = 0x2000, scoped, tag = 'output window, operand 0, single buffered']
    %8 = vsyncpa [#allocation4], 0
    %s9 = scalar_lea.sflag [#allocation4], 1
    %10 = vsyncpa %s9, 0
    %11 = vsyncpa [#allocation7], 0
    %s12 = scalar_lea.sflag [#allocation7], 1
    %13 = vsyncpa %s12, 0
    %14 = vsyncpa [#allocation5], 0
    loop: start=0, step=1, limit=5
    $region2: #{tpu_custom_call.1} parent=1 // loop_pre_header
      _
    $region3: #{tpu_custom_call.1} parent=1 // loop_header
      %s16 = sphi 0, %s20
      %p17 = scmp.ge.s32.totalorder %s16, 5
      %s23 = sphi 0, %s35
      %s24 = sphi 0, %s31
      %s25 = sphi 0, %s23
      %s26 = sphi 0, %s24
      %s27 = sphi 0, %s25
      %s28 = sphi 0, %s26
      %s40 = sphi 0, %s42
      %s43 = sphi 0, %s40
      %s44 = sphi 0, %s43
      %s60 = sphi 0, %s44
      %s66 = sphi 0, %s68
      %s69 = sphi 0, %s66
      %s70 = sphi 0, %s69
      %s86 = sphi 0, %s70
      %s90 = sphi 0, %s90
      %s92 = sphi 0, %s90
      %s93 = sphi 0, %s92
      %s107 = sphi 0, %s93
      %s113 = sphi 0, %s115
      %s116 = sphi 0, %s113
      %s117 = sphi 0, %s116
      %s133 = sphi 0, %s117
    $region4: #{tpu_custom_call.1} parent=1 // loop_header_branch
      %19 = sbr.rel (%p17) target = $region8
    $region5: #{tpu_custom_call.1} parent=1 // loop_body
      %s21 = ssub.s32 %s16, 1
      %s22 = ssub.s32 %s16, 2
      %s29 = sadd.s32 1, %s24
      %p30 = scmp.ge.s32.totalorder %s29, 3
      %s31 = scalar_select %p30, 0, %s29
      %s32 = sadd.s32 1, %s23
      %s33 = scalar_select %p30, %s32, %s23
      %p34 = scmp.ge.s32.totalorder %s33, 1
      %s35 = scalar_select %p34, 0, %s33
      %s36 = ssub.s32 %s23, %s35
      %s37 = ssub.s32 %s24, %s31
      %s38 = sor.u32 %s36, %s37
      %p39 = scmp.eq.s32.totalorder %s38, 0
      %s41 = sadd.s32 %s40, 1
      %s42 = scalar_select %p39, %s40, %s41
      %p45 = pneg %p39
      %p46 = scmp.eq.s32.totalorder %s16, 2
      %p47 = por %p45, %p46
      %p48 = scmp.ne.s32.totalorder %s40, %s43
      %p49 = scmp.eq.s32.totalorder %s16, 0
      %p50 = por %p48, %p49
      %p51 = scmp.ne.s32.totalorder %s40, %s43
      %p52 = scmp.eq.s32.totalorder %s21, 2
      %p53 = por %p51, %p52
      %p54 = scmp.ne.s32.totalorder %s43, %s44
      %p55 = scmp.eq.s32.totalorder %s21, 0
      %p56 = por %p54, %p55
      %p57 = scmp.ne.s32.totalorder %s43, %s44
      %p58 = scmp.eq.s32.totalorder %s22, 2
      %p59 = por %p57, %p58
      %p61 = scmp.ne.s32.totalorder %s44, %s60
      %p62 = scmp.eq.s32.totalorder %s22, 0
      %p63 = por %p61, %p62
      %s64 = ssub.s32 %s24, %s31
      %p65 = scmp.eq.s32.totalorder %s64, 0
      %s67 = sadd.s32 %s66, 1
      %s68 = scalar_select %p65, %s66, %s67
      %p71 = pneg %p65
      %p72 = scmp.eq.s32.totalorder %s16, 2
      %p73 = por %p71, %p72
      %p74 = scmp.ne.s32.totalorder %s66, %s69
      %p75 = scmp.eq.s32.totalorder %s16, 0
      %p76 = por %p74, %p75
      %p77 = scmp.ne.s32.totalorder %s66, %s69
      %p78 = scmp.eq.s32.totalorder %s21, 2
      %p79 = por %p77, %p78
      %p80 = scmp.ne.s32.totalorder %s69, %s70
      %p81 = scmp.eq.s32.totalorder %s21, 0
      %p82 = por %p80, %p81
      %p83 = scmp.ne.s32.totalorder %s69, %s70
      %p84 = scmp.eq.s32.totalorder %s22, 2
      %p85 = por %p83, %p84
      %p87 = scmp.ne.s32.totalorder %s70, %s86
      %p88 = scmp.eq.s32.totalorder %s22, 0
      %p89 = por %p87, %p88
      %s91 = sadd.s32 %s90, 1
      %p94 = scmp.eq.s32.totalorder %s16, 2
      %p95 = scmp.ne.s32.totalorder %s90, %s92
      %p96 = scmp.eq.s32.totalorder %s16, 0
      %p97 = por %p95, %p96
      %p98 = scmp.ne.s32.totalorder %s90, %s92
      %p99 = scmp.eq.s32.totalorder %s21, 2
      %p100 = por %p98, %p99
      %p101 = scmp.ne.s32.totalorder %s92, %s93
      %p102 = scmp.eq.s32.totalorder %s21, 0
      %p103 = por %p101, %p102
      %p104 = scmp.ne.s32.totalorder %s92, %s93
      %p105 = scmp.eq.s32.totalorder %s22, 2
      %p106 = por %p104, %p105
      %p108 = scmp.ne.s32.totalorder %s93, %s107
      %p109 = scmp.eq.s32.totalorder %s22, 0
      %p110 = por %p108, %p109
      %s111 = ssub.s32 %s23, %s35
      %p112 = scmp.eq.s32.totalorder %s111, 0
      %s114 = sadd.s32 %s113, 1
      %s115 = scalar_select %p112, %s113, %s114
      %p118 = pneg %p112
      %p119 = scmp.eq.s32.totalorder %s16, 2
      %p120 = por %p118, %p119
      %p121 = scmp.ne.s32.totalorder %s113, %s116
      %p122 = scmp.eq.s32.totalorder %s16, 0
      %p123 = por %p121, %p122
      %p124 = scmp.ne.s32.totalorder %s113, %s116
      %p125 = scmp.eq.s32.totalorder %s21, 2
      %p126 = por %p124, %p125
      %p127 = scmp.ne.s32.totalorder %s116, %s117
      %p128 = scmp.eq.s32.totalorder %s21, 0
      %p129 = por %p127, %p128
      %p130 = scmp.ne.s32.totalorder %s116, %s117
      %p131 = scmp.eq.s32.totalorder %s22, 2
      %p132 = por %p130, %p131
      %p134 = scmp.ne.s32.totalorder %s117, %s133
      %p135 = scmp.eq.s32.totalorder %s22, 0
      %p136 = por %p134, %p135
      %p137 = scmp.le.s32.totalorder 1, %s16
      %p138 = scmp.lt.s32.totalorder %s16, 4
      %p139 = pnand %p137, %p138
      %p140 = pneg %p139
      // Predicated region
      $region9: #{tpu_custom_call.1} parent=5 // pred_check
        _
      $region10: #{tpu_custom_call.1} parent=5 // pred_check_branch
        %142 = sbr.rel (%p139) target = $region12
      $region11: #{tpu_custom_call.1} parent=5 // pred_region
        %s143 = ssub.s32 %s16, 1
        // Predicated region
        $region13: #{tpu_custom_call.1} parent=11 // pred_check
          %p144 = pneg %p103
        $region14: #{tpu_custom_call.1} parent=11 // pred_check_branch
          %146 = sbr.rel (%p144) target = $region16
        $region15: #{tpu_custom_call.1} parent=11 // pred_region
          %s148 = ssub.s32 32, 32
          %149 = vsyncadd [#allocation7], %s148
          %s151 = sshll.u32 [#allocation8], 4
          %s152 = int_to_ptr.vmem [resolvable:$true] %s151
          %154 = dma.hbm_to_vmem [thread:$0]  %s2, 32, %s152, [#allocation7]
        $region16: #{tpu_custom_call.1} parent=11 // pred_fallthru
          _
      $region12: #{tpu_custom_call.1} parent=5 // pred_fallthru
        _
      %p155 = scmp.lt.s32.totalorder %s16, 3
      // Predicated region
      $region17: #{tpu_custom_call.1} parent=5 // pred_check
        %p156 = pneg %p155
      $region18: #{tpu_custom_call.1} parent=5 // pred_check_branch
        %158 = sbr.rel (%p156) target = $region20
      $region19: #{tpu_custom_call.1} parent=5 // pred_region
        // Predicated region
        $region21: #{tpu_custom_call.1} parent=19 // pred_check
          %p159 = pneg %p50
        $region22: #{tpu_custom_call.1} parent=19 // pred_check_branch
          %161 = sbr.rel (%p159) target = $region24
        $region23: #{tpu_custom_call.1} parent=19 // pred_region
          %s162 = sand.u32 %s40, 1
          %s163 = scalar_lea.sflag [#allocation4], %s162
          %s164 = sand.u32 %s40, 1
          %s165 = smul.addr %s164, 32
          %s166 = scalar_lea.vmem [#allocation3], %s165
          %s167 = smul.u32 8, %s24
          %s169 = ssub.s32 512, 512
          %170 = vsyncadd %s163, %s169
          %s171 = smul.addr %s23, 24
          %s172 = sadd.s32 %s167, %s171
          %s173 = smul.addr %s172, 64
          %s174 = scalar_lea.hbm %s0, %s173
          %s176 = sshll.u32 %s166, 4
          %s177 = int_to_ptr.vmem [resolvable:$true] %s176
          %179 = dma.hbm_to_vmem [thread:$0]  %s174, 512, %s177, %s163
        $region24: #{tpu_custom_call.1} parent=19 // pred_fallthru
          _
        // Predicated region
        $region25: #{tpu_custom_call.1} parent=19 // pred_check
          %p180 = pneg %p76
        $region26: #{tpu_custom_call.1} parent=19 // pred_check_branch
          %182 = sbr.rel (%p180) target = $region28
        $region27: #{tpu_custom_call.1} parent=19 // pred_region
          %s183 = sand.u32 %s16, 1
          %s184 = scalar_lea.sflag [#allocation7], %s183
          %s185 = sand.u32 %s66, 1
          %s186 = smul.addr %s185, 1024
          %s187 = scalar_lea.vmem [#allocation6], %s186
          %s188 = smul.u32 128, %s24
          %s190 = ssub.s32 16384, 16384
          %191 = vsyncadd %s184, %s190
          %s192 = smul.addr %s188, 2
          %s193 = smul.addr %s192, 64
          %s194 = scalar_lea.hbm %s1, %s193
          %s195 = sshll.u32 %s187, 4
          %s196 = int_to_ptr.vmem [resolvable:$true] %s195
          %201 = dma.hbm_to_vmem [thread:$0]  %s194, 16384, %s196, %s184, 128, 128, 8
        $region28: #{tpu_custom_call.1} parent=19 // pred_fallthru
          _
      $region20: #{tpu_custom_call.1} parent=5 // pred_fallthru
        _
      %p202 = scmp.le.s32.totalorder 1, %s16
      %p203 = scmp.lt.s32.totalorder %s16, 4
      %p204 = pnand %p202, %p203
      %p205 = pneg %p204
      // Predicated region
      $region29: #{tpu_custom_call.1} parent=5 // pred_check
        _
      $region30: #{tpu_custom_call.1} parent=5 // pred_check_branch
        %207 = sbr.rel (%p204) target = $region32
      $region31: #{tpu_custom_call.1} parent=5 // pred_region
        %s208 = ssub.s32 %s16, 1
        %s209 = sand.u32 %s43, 1
        %s210 = scalar_lea.sflag [#allocation4], %s209
        %s211 = sand.u32 %s43, 1
        %s212 = smul.addr %s211, 32
        %s213 = scalar_lea.vmem [#allocation3], %s212
        // Predicated region
        $region33: #{tpu_custom_call.1} parent=31 // pred_check
          %p214 = pneg %p56
        $region34: #{tpu_custom_call.1} parent=31 // pred_check_branch
          %216 = sbr.rel (%p214) target = $region36
        $region35: #{tpu_custom_call.1} parent=31 // pred_region
          %217 = dma.done %s210, 512
        $region36: #{tpu_custom_call.1} parent=31 // pred_fallthru
          _
        %s218 = sand.u32 %s21, 1
        %s219 = scalar_lea.sflag [#allocation7], %s218
        %s220 = sand.u32 %s69, 1
        %s221 = smul.addr %s220, 1024
        %s222 = scalar_lea.vmem [#allocation6], %s221
        // Predicated region
        $region37: #{tpu_custom_call.1} parent=31 // pred_check
          %p223 = pneg %p82
        $region38: #{tpu_custom_call.1} parent=31 // pred_check_branch
          %225 = sbr.rel (%p223) target = $region40
        $region39: #{tpu_custom_call.1} parent=31 // pred_region
          %226 = dma.done %s219, 16384
        $region40: #{tpu_custom_call.1} parent=31 // pred_fallthru
          _
        // Predicated region
        $region41: #{tpu_custom_call.1} parent=31 // pred_check
          %p227 = pneg %p103
        $region42: #{tpu_custom_call.1} parent=31 // pred_check_branch
          %229 = sbr.rel (%p227) target = $region44
        $region43: #{tpu_custom_call.1} parent=31 // pred_region
          %230 = dma.done [#allocation7], 32
        $region44: #{tpu_custom_call.1} parent=31 // pred_fallthru
          _
        %s231 = sand.u32 %s43, 1
        %s232 = scalar_lea.sflag [#allocation4], %s231
        %s233 = sand.u32 %s43, 1
        %s234 = smul.addr %s233, 32
        %s235 = scalar_lea.vmem [#allocation3], %s234
        %p236 = pneg %p56
        %p237 = pneg %p53
        %s238 = sand.u32 %s21, 1
        %s239 = scalar_lea.sflag [#allocation7], %s238
        %s240 = sand.u32 %s69, 1
        %s241 = smul.addr %s240, 1024
        %s242 = scalar_lea.vmem [#allocation6], %s241
        %p243 = pneg %p82
        %p244 = pneg %p79
        %p245 = pneg %p103
        %p246 = pneg %p100
        %p247 = pneg %p129
        %p248 = pneg %p126
        %s249 = smul.u32 8, %s26
        %s250 = smul.u32 128, %s26
        %p251 = scmp.eq.s32.totalorder %s26, 0
        // Predicated region
        $region45: #{tpu_custom_call.1} parent=31 // pred_check
          %p252 = pneg %p251
        $region46: #{tpu_custom_call.1} parent=31 // pred_check_branch
          %254 = sbr.rel (%p252) target = $region48
        $region47: #{tpu_custom_call.1} parent=31 // pred_region
          %255 = vst [vmem:[#allocation2] sm:$0xff] 0.0
          %256 = vst [vmem:[#allocation2 + $0x8] sm:$0xff] 0.0
        $region48: #{tpu_custom_call.1} parent=31 // pred_fallthru
          _
        %v257 = vld [vmem:[#allocation2] sm:$0xff]
        %v258 = vld [vmem:[#allocation2 + $0x8] sm:$0xff]
        %v259 = vld [vmem:[%s213] sm:$0xff]
        %v260 = vld [vmem:[%s213 + $0x8] sm:$0xff]
        %v261 = vld [vmem:[%s213 + $0x10] sm:$0xff]
        %v262 = vld [vmem:[%s213 + $0x18] sm:$0xff]
        %v263 = vld [vmem:[%s222] sm:$0xff]
        %v264 = vld [vmem:[%s222 + $0x8] sm:$0xff]
        %v265 = vld [vmem:[%s222 + $0x10] sm:$0xff]
        %v266 = vld [vmem:[%s222 + $0x18] sm:$0xff]
        %v267 = vld [vmem:[%s222 + $0x20] sm:$0xff]
        %v268 = vld [vmem:[%s222 + $0x28] sm:$0xff]
        %v269 = vld [vmem:[%s222 + $0x30] sm:$0xff]
        %v270 = vld [vmem:[%s222 + $0x38] sm:$0xff]
        %v271 = vld [vmem:[%s222 + $0x40] sm:$0xff]
        %v272 = vld [vmem:[%s222 + $0x48] sm:$0xff]
        %v273 = vld [vmem:[%s222 + $0x50] sm:$0xff]
        %v274 = vld [vmem:[%s222 + $0x58] sm:$0xff]
        %v275 = vld [vmem:[%s222 + $0x60] sm:$0xff]
        %v276 = vld [vmem:[%s222 + $0x68] sm:$0xff]
        %v277 = vld [vmem:[%s222 + $0x70] sm:$0xff]
        %v278 = vld [vmem:[%s222 + $0x78] sm:$0xff]
        %v279 = vld [vmem:[%s222 + $0x80] sm:$0xff]
        %v280 = vld [vmem:[%s222 + $0x88] sm:$0xff]
        %v281 = vld [vmem:[%s222 + $0x90] sm:$0xff]
        %v282 = vld [vmem:[%s222 + $0x98] sm:$0xff]
        %v283 = vld [vmem:[%s222 + $0xa0] sm:$0xff]
        %v284 = vld [vmem:[%s222 + $0xa8] sm:$0xff]
        %v285 = vld [vmem:[%s222 + $0xb0] sm:$0xff]
        %v286 = vld [vmem:[%s222 + $0xb8] sm:$0xff]
        %v287 = vld [vmem:[%s222 + $0xc0] sm:$0xff]
        %v288 = vld [vmem:[%s222 + $0xc8] sm:$0xff]
        %v289 = vld [vmem:[%s222 + $0xd0] sm:$0xff]
        %v290 = vld [vmem:[%s222 + $0xd8] sm:$0xff]
        %v291 = vld [vmem:[%s222 + $0xe0] sm:$0xff]
        %v292 = vld [vmem:[%s222 + $0xe8] sm:$0xff]
        %v293 = vld [vmem:[%s222 + $0xf0] sm:$0xff]
        %v294 = vld [vmem:[%s222 + $0xf8] sm:$0xff]
        %v295 = vld [vmem:[%s222 + $0x100] sm:$0xff]
        %v296 = vld [vmem:[%s222 + $0x108] sm:$0xff]
        %v297 = vld [vmem:[%s222 + $0x110] sm:$0xff]
        %v298 = vld [vmem:[%s222 + $0x118] sm:$0xff]
        %v299 = vld [vmem:[%s222 + $0x120] sm:$0xff]
        %v300 = vld [vmem:[%s222 + $0x128] sm:$0xff]
        %v301 = vld [vmem:[%s222 + $0x130] sm:$0xff]
        %v302 = vld [vmem:[%s222 + $0x138] sm:$0xff]
        %v303 = vld [vmem:[%s222 + $0x140] sm:$0xff]
        %v304 = vld [vmem:[%s222 + $0x148] sm:$0xff]
        %v305 = vld [vmem:[%s222 + $0x150] sm:$0xff]
        %v306 = vld [vmem:[%s222 + $0x158] sm:$0xff]
        %v307 = vld [vmem:[%s222 + $0x160] sm:$0xff]
        %v308 = vld [vmem:[%s222 + $0x168] sm:$0xff]
        %v309 = vld [vmem:[%s222 + $0x170] sm:$0xff]
        %v310 = vld [vmem:[%s222 + $0x178] sm:$0xff]
        %v311 = vld [vmem:[%s222 + $0x180] sm:$0xff]
        %v312 = vld [vmem:[%s222 + $0x188] sm:$0xff]
        %v313 = vld [vmem:[%s222 + $0x190] sm:$0xff]
        %v314 = vld [vmem:[%s222 + $0x198] sm:$0xff]
        %v315 = vld [vmem:[%s222 + $0x1a0] sm:$0xff]
        %v316 = vld [vmem:[%s222 + $0x1a8] sm:$0xff]
        %v317 = vld [vmem:[%s222 + $0x1b0] sm:$0xff]
        %v318 = vld [vmem:[%s222 + $0x1b8] sm:$0xff]
        %v319 = vld [vmem:[%s222 + $0x1c0] sm:$0xff]
        %v320 = vld [vmem:[%s222 + $0x1c8] sm:$0xff]
        %v321 = vld [vmem:[%s222 + $0x1d0] sm:$0xff]
        %v322 = vld [vmem:[%s222 + $0x1d8] sm:$0xff]
        %v323 = vld [vmem:[%s222 + $0x1e0] sm:$0xff]
        %v324 = vld [vmem:[%s222 + $0x1e8] sm:$0xff]
        %v325 = vld [vmem:[%s222 + $0x1f0] sm:$0xff]
        %v326 = vld [vmem:[%s222 + $0x1f8] sm:$0xff]
        %v327 = vld [vmem:[%s222 + $0x200] sm:$0xff]
        %v328 = vld [vmem:[%s222 + $0x208] sm:$0xff]
        %v329 = vld [vmem:[%s222 + $0x210] sm:$0xff]
        %v330 = vld [vmem:[%s222 + $0x218] sm:$0xff]
        %v331 = vld [vmem:[%s222 + $0x220] sm:$0xff]
        %v332 = vld [vmem:[%s222 + $0x228] sm:$0xff]
        %v333 = vld [vmem:[%s222 + $0x230] sm:$0xff]
        %v334 = vld [vmem:[%s222 + $0x238] sm:$0xff]
        %v335 = vld [vmem:[%s222 + $0x240] sm:$0xff]
        %v336 = vld [vmem:[%s222 + $0x248] sm:$0xff]
        %v337 = vld [vmem:[%s222 + $0x250] sm:$0xff]
        %v338 = vld [vmem:[%s222 + $0x258] sm:$0xff]
        %v339 = vld [vmem:[%s222 + $0x260] sm:$0xff]
        %v340 = vld [vmem:[%s222 + $0x268] sm:$0xff]
        %v341 = vld [vmem:[%s222 + $0x270] sm:$0xff]
        %v342 = vld [vmem:[%s222 + $0x278] sm:$0xff]
        %v343 = vld [vmem:[%s222 + $0x280] sm:$0xff]
        %v344 = vld [vmem:[%s222 + $0x288] sm:$0xff]
        %v345 = vld [vmem:[%s222 + $0x290] sm:$0xff]
        %v346 = vld [vmem:[%s222 + $0x298] sm:$0xff]
        %v347 = vld [vmem:[%s222 + $0x2a0] sm:$0xff]
        %v348 = vld [vmem:[%s222 + $0x2a8] sm:$0xff]
        %v349 = vld [vmem:[%s222 + $0x2b0] sm:$0xff]
        %v350 = vld [vmem:[%s222 + $0x2b8] sm:$0xff]
        %v351 = vld [vmem:[%s222 + $0x2c0] sm:$0xff]
        %v352 = vld [vmem:[%s222 + $0x2c8] sm:$0xff]
        %v353 = vld [vmem:[%s222 + $0x2d0] sm:$0xff]
        %v354 = vld [vmem:[%s222 + $0x2d8] sm:$0xff]
        %v355 = vld [vmem:[%s222 + $0x2e0] sm:$0xff]
        %v356 = vld [vmem:[%s222 + $0x2e8] sm:$0xff]
        %v357 = vld [vmem:[%s222 + $0x2f0] sm:$0xff]
        %v358 = vld [vmem:[%s222 + $0x2f8] sm:$0xff]
        %v359 = vld [vmem:[%s222 + $0x300] sm:$0xff]
        %v360 = vld [vmem:[%s222 + $0x308] sm:$0xff]
        %v361 = vld [vmem:[%s222 + $0x310] sm:$0xff]
        %v362 = vld [vmem:[%s222 + $0x318] sm:$0xff]
        %v363 = vld [vmem:[%s222 + $0x320] sm:$0xff]
        %v364 = vld [vmem:[%s222 + $0x328] sm:$0xff]
        %v365 = vld [vmem:[%s222 + $0x330] sm:$0xff]
        %v366 = vld [vmem:[%s222 + $0x338] sm:$0xff]
        %v367 = vld [vmem:[%s222 + $0x340] sm:$0xff]
        %v368 = vld [vmem:[%s222 + $0x348] sm:$0xff]
        %v369 = vld [vmem:[%s222 + $0x350] sm:$0xff]
        %v370 = vld [vmem:[%s222 + $0x358] sm:$0xff]
        %v371 = vld [vmem:[%s222 + $0x360] sm:$0xff]
        %v372 = vld [vmem:[%s222 + $0x368] sm:$0xff]
        %v373 = vld [vmem:[%s222 + $0x370] sm:$0xff]
        %v374 = vld [vmem:[%s222 + $0x378] sm:$0xff]
        %v375 = vld [vmem:[%s222 + $0x380] sm:$0xff]
        %v376 = vld [vmem:[%s222 + $0x388] sm:$0xff]
        %v377 = vld [vmem:[%s222 + $0x390] sm:$0xff]
        %v378 = vld [vmem:[%s222 + $0x398] sm:$0xff]
        %v379 = vld [vmem:[%s222 + $0x3a0] sm:$0xff]
        %v380 = vld [vmem:[%s222 + $0x3a8] sm:$0xff]
        %v381 = vld [vmem:[%s222 + $0x3b0] sm:$0xff]
        %v382 = vld [vmem:[%s222 + $0x3b8] sm:$0xff]
        %v383 = vld [vmem:[%s222 + $0x3c0] sm:$0xff]
        %v384 = vld [vmem:[%s222 + $0x3c8] sm:$0xff]
        %v385 = vld [vmem:[%s222 + $0x3d0] sm:$0xff]
        %v386 = vld [vmem:[%s222 + $0x3d8] sm:$0xff]
        %v387 = vld [vmem:[%s222 + $0x3e0] sm:$0xff]
        %v388 = vld [vmem:[%s222 + $0x3e8] sm:$0xff]
        %v389 = vld [vmem:[%s222 + $0x3f0] sm:$0xff]
        %v390 = vld [vmem:[%s222 + $0x3f8] sm:$0xff]
        %v395 = vunpack.c.l.b16 %v259
        %v396 = vunpack.c.h.b16 %v259
        %v397 = vunpack.c.l.b16 %v260
        %v398 = vunpack.c.h.b16 %v260
        %v399 = vunpack.c.l.b16 %v261
        %v400 = vunpack.c.h.b16 %v261
        %v401 = vunpack.c.l.b16 %v262
        %v402 = vunpack.c.h.b16 %v262
        %v403 = vpack.c.b16 %v395, %v395
        %v404 = vpack.c.b16 %v396, %v396
        %v405 = vpack.c.b16 %v397, %v397
        %v406 = vpack.c.b16 %v398, %v398
        %v407 = vpack.c.b16 %v399, %v399
        %v408 = vpack.c.b16 %v400, %v400
        %v409 = vpack.c.b16 %v401, %v401
        %v410 = vpack.c.b16 %v402, %v402
        %v547 = vunpack.c.l.b16 %v263
        %v548 = vunpack.c.h.b16 %v263
        %v549 = vunpack.c.l.b16 %v264
        %v550 = vunpack.c.h.b16 %v264
        %v551 = vunpack.c.l.b16 %v265
        %v552 = vunpack.c.h.b16 %v265
        %v553 = vunpack.c.l.b16 %v266
        %v554 = vunpack.c.h.b16 %v266
        %v555 = vunpack.c.l.b16 %v267
        %v556 = vunpack.c.h.b16 %v267
        %v557 = vunpack.c.l.b16 %v268
        %v558 = vunpack.c.h.b16 %v268
        %v559 = vunpack.c.l.b16 %v269
        %v560 = vunpack.c.h.b16 %v269
        %v561 = vunpack.c.l.b16 %v270
        %v562 = vunpack.c.h.b16 %v270
        %v563 = vunpack.c.l.b16 %v271
        %v564 = vunpack.c.h.b16 %v271
        %v565 = vunpack.c.l.b16 %v272
        %v566 = vunpack.c.h.b16 %v272
        %v567 = vunpack.c.l.b16 %v273
        %v568 = vunpack.c.h.b16 %v273
        %v569 = vunpack.c.l.b16 %v274
        %v570 = vunpack.c.h.b16 %v274
        %v571 = vunpack.c.l.b16 %v275
        %v572 = vunpack.c.h.b16 %v275
        %v573 = vunpack.c.l.b16 %v276
        %v574 = vunpack.c.h.b16 %v276
        %v575 = vunpack.c.l.b16 %v277
        %v576 = vunpack.c.h.b16 %v277
        %v577 = vunpack.c.l.b16 %v278
        %v578 = vunpack.c.h.b16 %v278
        %v579 = vunpack.c.l.b16 %v279
        %v580 = vunpack.c.h.b16 %v279
        %v581 = vunpack.c.l.b16 %v280
        %v582 = vunpack.c.h.b16 %v280
        %v583 = vunpack.c.l.b16 %v281
        %v584 = vunpack.c.h.b16 %v281
        %v585 = vunpack.c.l.b16 %v282
        %v586 = vunpack.c.h.b16 %v282
        %v587 = vunpack.c.l.b16 %v283
        %v588 = vunpack.c.h.b16 %v283
        %v589 = vunpack.c.l.b16 %v284
        %v590 = vunpack.c.h.b16 %v284
        %v591 = vunpack.c.l.b16 %v285
        %v592 = vunpack.c.h.b16 %v285
        %v593 = vunpack.c.l.b16 %v286
        %v594 = vunpack.c.h.b16 %v286
        %v595 = vunpack.c.l.b16 %v287
        %v596 = vunpack.c.h.b16 %v287
        %v597 = vunpack.c.l.b16 %v288
        %v598 = vunpack.c.h.b16 %v288
        %v599 = vunpack.c.l.b16 %v289
        %v600 = vunpack.c.h.b16 %v289
        %v601 = vunpack.c.l.b16 %v290
        %v602 = vunpack.c.h.b16 %v290
        %v603 = vunpack.c.l.b16 %v291
        %v604 = vunpack.c.h.b16 %v291
        %v605 = vunpack.c.l.b16 %v292
        %v606 = vunpack.c.h.b16 %v292
        %v607 = vunpack.c.l.b16 %v293
        %v608 = vunpack.c.h.b16 %v293
        %v609 = vunpack.c.l.b16 %v294
        %v610 = vunpack.c.h.b16 %v294
        %v611 = vunpack.c.l.b16 %v295
        %v612 = vunpack.c.h.b16 %v295
        %v613 = vunpack.c.l.b16 %v296
        %v614 = vunpack.c.h.b16 %v296
        %v615 = vunpack.c.l.b16 %v297
        %v616 = vunpack.c.h.b16 %v297
        %v617 = vunpack.c.l.b16 %v298
        %v618 = vunpack.c.h.b16 %v298
        %v619 = vunpack.c.l.b16 %v299
        %v620 = vunpack.c.h.b16 %v299
        %v621 = vunpack.c.l.b16 %v300
        %v622 = vunpack.c.h.b16 %v300
        %v623 = vunpack.c.l.b16 %v301
        %v624 = vunpack.c.h.b16 %v301
        %v625 = vunpack.c.l.b16 %v302
        %v626 = vunpack.c.h.b16 %v302
        %v627 = vunpack.c.l.b16 %v303
        %v628 = vunpack.c.h.b16 %v303
        %v629 = vunpack.c.l.b16 %v304
        %v630 = vunpack.c.h.b16 %v304
        %v631 = vunpack.c.l.b16 %v305
        %v632 = vunpack.c.h.b16 %v305
        %v633 = vunpack.c.l.b16 %v306
        %v634 = vunpack.c.h.b16 %v306
        %v635 = vunpack.c.l.b16 %v307
        %v636 = vunpack.c.h.b16 %v307
        %v637 = vunpack.c.l.b16 %v308
        %v638 = vunpack.c.h.b16 %v308
        %v639 = vunpack.c.l.b16 %v309
        %v640 = vunpack.c.h.b16 %v309
        %v641 = vunpack.c.l.b16 %v310
        %v642 = vunpack.c.h.b16 %v310
        %v643 = vunpack.c.l.b16 %v311
        %v644 = vunpack.c.h.b16 %v311
        %v645 = vunpack.c.l.b16 %v312
        %v646 = vunpack.c.h.b16 %v312
        %v647 = vunpack.c.l.b16 %v313
        %v648 = vunpack.c.h.b16 %v313
        %v649 = vunpack.c.l.b16 %v314
        %v650 = vunpack.c.h.b16 %v314
        %v651 = vunpack.c.l.b16 %v315
        %v652 = vunpack.c.h.b16 %v315
        %v653 = vunpack.c.l.b16 %v316
        %v654 = vunpack.c.h.b16 %v316
        %v655 = vunpack.c.l.b16 %v317
        %v656 = vunpack.c.h.b16 %v317
        %v657 = vunpack.c.l.b16 %v318
        %v658 = vunpack.c.h.b16 %v318
        %v659 = vunpack.c.l.b16 %v319
        %v660 = vunpack.c.h.b16 %v319
        %v661 = vunpack.c.l.b16 %v320
        %v662 = vunpack.c.h.b16 %v320
        %v663 = vunpack.c.l.b16 %v321
        %v664 = vunpack.c.h.b16 %v321
        %v665 = vunpack.c.l.b16 %v322
        %v666 = vunpack.c.h.b16 %v322
        %v667 = vunpack.c.l.b16 %v323
        %v668 = vunpack.c.h.b16 %v323
        %v669 = vunpack.c.l.b16 %v324
        %v670 = vunpack.c.h.b16 %v324
        %v671 = vunpack.c.l.b16 %v325
        %v672 = vunpack.c.h.b16 %v325
        %v673 = vunpack.c.l.b16 %v326
        %v674 = vunpack.c.h.b16 %v326
        %v675 = vunpack.c.l.b16 %v327
        %v676 = vunpack.c.h.b16 %v327
        %v677 = vunpack.c.l.b16 %v328
        %v678 = vunpack.c.h.b16 %v328
        %v679 = vunpack.c.l.b16 %v329
        %v680 = vunpack.c.h.b16 %v329
        %v681 = vunpack.c.l.b16 %v330
        %v682 = vunpack.c.h.b16 %v330
        %v683 = vunpack.c.l.b16 %v331
        %v684 = vunpack.c.h.b16 %v331
        %v685 = vunpack.c.l.b16 %v332
        %v686 = vunpack.c.h.b16 %v332
        %v687 = vunpack.c.l.b16 %v333
        %v688 = vunpack.c.h.b16 %v333
        %v689 = vunpack.c.l.b16 %v334
        %v690 = vunpack.c.h.b16 %v334
        %v691 = vunpack.c.l.b16 %v335
        %v692 = vunpack.c.h.b16 %v335
        %v693 = vunpack.c.l.b16 %v336
        %v694 = vunpack.c.h.b16 %v336
        %v695 = vunpack.c.l.b16 %v337
        %v696 = vunpack.c.h.b16 %v337
        %v697 = vunpack.c.l.b16 %v338
        %v698 = vunpack.c.h.b16 %v338
        %v699 = vunpack.c.l.b16 %v339
        %v700 = vunpack.c.h.b16 %v339
        %v701 = vunpack.c.l.b16 %v340
        %v702 = vunpack.c.h.b16 %v340
        %v703 = vunpack.c.l.b16 %v341
        %v704 = vunpack.c.h.b16 %v341
        %v705 = vunpack.c.l.b16 %v342
        %v706 = vunpack.c.h.b16 %v342
        %v707 = vunpack.c.l.b16 %v343
        %v708 = vunpack.c.h.b16 %v343
        %v709 = vunpack.c.l.b16 %v344
        %v710 = vunpack.c.h.b16 %v344
        %v711 = vunpack.c.l.b16 %v345
        %v712 = vunpack.c.h.b16 %v345
        %v713 = vunpack.c.l.b16 %v346
        %v714 = vunpack.c.h.b16 %v346
        %v715 = vunpack.c.l.b16 %v347
        %v716 = vunpack.c.h.b16 %v347
        %v717 = vunpack.c.l.b16 %v348
        %v718 = vunpack.c.h.b16 %v348
        %v719 = vunpack.c.l.b16 %v349
        %v720 = vunpack.c.h.b16 %v349
        %v721 = vunpack.c.l.b16 %v350
        %v722 = vunpack.c.h.b16 %v350
        %v723 = vunpack.c.l.b16 %v351
        %v724 = vunpack.c.h.b16 %v351
        %v725 = vunpack.c.l.b16 %v352
        %v726 = vunpack.c.h.b16 %v352
        %v727 = vunpack.c.l.b16 %v353
        %v728 = vunpack.c.h.b16 %v353
        %v729 = vunpack.c.l.b16 %v354
        %v730 = vunpack.c.h.b16 %v354
        %v731 = vunpack.c.l.b16 %v355
        %v732 = vunpack.c.h.b16 %v355
        %v733 = vunpack.c.l.b16 %v356
        %v734 = vunpack.c.h.b16 %v356
        %v735 = vunpack.c.l.b16 %v357
        %v736 = vunpack.c.h.b16 %v357
        %v737 = vunpack.c.l.b16 %v358
        %v738 = vunpack.c.h.b16 %v358
        %v739 = vunpack.c.l.b16 %v359
        %v740 = vunpack.c.h.b16 %v359
        %v741 = vunpack.c.l.b16 %v360
        %v742 = vunpack.c.h.b16 %v360
        %v743 = vunpack.c.l.b16 %v361
        %v744 = vunpack.c.h.b16 %v361
        %v745 = vunpack.c.l.b16 %v362
        %v746 = vunpack.c.h.b16 %v362
        %v747 = vunpack.c.l.b16 %v363
        %v748 = vunpack.c.h.b16 %v363
        %v749 = vunpack.c.l.b16 %v364
        %v750 = vunpack.c.h.b16 %v364
        %v751 = vunpack.c.l.b16 %v365
        %v752 = vunpack.c.h.b16 %v365
        %v753 = vunpack.c.l.b16 %v366
        %v754 = vunpack.c.h.b16 %v366
        %v755 = vunpack.c.l.b16 %v367
        %v756 = vunpack.c.h.b16 %v367
        %v757 = vunpack.c.l.b16 %v368
        %v758 = vunpack.c.h.b16 %v368
        %v759 = vunpack.c.l.b16 %v369
        %v760 = vunpack.c.h.b16 %v369
        %v761 = vunpack.c.l.b16 %v370
        %v762 = vunpack.c.h.b16 %v370
        %v763 = vunpack.c.l.b16 %v371
        %v764 = vunpack.c.h.b16 %v371
        %v765 = vunpack.c.l.b16 %v372
        %v766 = vunpack.c.h.b16 %v372
        %v767 = vunpack.c.l.b16 %v373
        %v768 = vunpack.c.h.b16 %v373
        %v769 = vunpack.c.l.b16 %v374
        %v770 = vunpack.c.h.b16 %v374
        %v771 = vunpack.c.l.b16 %v375
        %v772 = vunpack.c.h.b16 %v375
        %v773 = vunpack.c.l.b16 %v376
        %v774 = vunpack.c.h.b16 %v376
        %v775 = vunpack.c.l.b16 %v377
        %v776 = vunpack.c.h.b16 %v377
        %v777 = vunpack.c.l.b16 %v378
        %v778 = vunpack.c.h.b16 %v378
        %v779 = vunpack.c.l.b16 %v379
        %v780 = vunpack.c.h.b16 %v379
        %v781 = vunpack.c.l.b16 %v380
        %v782 = vunpack.c.h.b16 %v380
        %v783 = vunpack.c.l.b16 %v381
        %v784 = vunpack.c.h.b16 %v381
        %v785 = vunpack.c.l.b16 %v382
        %v786 = vunpack.c.h.b16 %v382
        %v787 = vunpack.c.l.b16 %v383
        %v788 = vunpack.c.h.b16 %v383
        %v789 = vunpack.c.l.b16 %v384
        %v790 = vunpack.c.h.b16 %v384
        %v791 = vunpack.c.l.b16 %v385
        %v792 = vunpack.c.h.b16 %v385
        %v793 = vunpack.c.l.b16 %v386
        %v794 = vunpack.c.h.b16 %v386
        %v795 = vunpack.c.l.b16 %v387
        %v796 = vunpack.c.h.b16 %v387
        %v797 = vunpack.c.l.b16 %v388
        %v798 = vunpack.c.h.b16 %v388
        %v799 = vunpack.c.l.b16 %v389
        %v800 = vunpack.c.h.b16 %v389
        %v801 = vunpack.c.l.b16 %v390
        %v802 = vunpack.c.h.b16 %v390
        %v803 = vpack.c.b16 %v549, %v547
        %v804 = vpack.c.b16 %v550, %v548
        %v805 = vpack.c.b16 %v553, %v551
        %v806 = vpack.c.b16 %v554, %v552
        %v807 = vpack.c.b16 %v557, %v555
        %v808 = vpack.c.b16 %v558, %v556
        %v809 = vpack.c.b16 %v561, %v559
        %v810 = vpack.c.b16 %v562, %v560
        %v811 = vpack.c.b16 %v565, %v563
        %v812 = vpack.c.b16 %v566, %v564
        %v813 = vpack.c.b16 %v569, %v567
        %v814 = vpack.c.b16 %v570, %v568
        %v815 = vpack.c.b16 %v573, %v571
        %v816 = vpack.c.b16 %v574, %v572
        %v817 = vpack.c.b16 %v577, %v575
        %v818 = vpack.c.b16 %v578, %v576
        %v819 = vpack.c.b16 %v581, %v579
        %v820 = vpack.c.b16 %v582, %v580
        %v821 = vpack.c.b16 %v585, %v583
        %v822 = vpack.c.b16 %v586, %v584
        %v823 = vpack.c.b16 %v589, %v587
        %v824 = vpack.c.b16 %v590, %v588
        %v825 = vpack.c.b16 %v593, %v591
        %v826 = vpack.c.b16 %v594, %v592
        %v827 = vpack.c.b16 %v597, %v595
        %v828 = vpack.c.b16 %v598, %v596
        %v829 = vpack.c.b16 %v601, %v599
        %v830 = vpack.c.b16 %v602, %v600
        %v831 = vpack.c.b16 %v605, %v603
        %v832 = vpack.c.b16 %v606, %v604
        %v833 = vpack.c.b16 %v609, %v607
        %v834 = vpack.c.b16 %v610, %v608
        %v835 = vpack.c.b16 %v613, %v611
        %v836 = vpack.c.b16 %v614, %v612
        %v837 = vpack.c.b16 %v617, %v615
        %v838 = vpack.c.b16 %v618, %v616
        %v839 = vpack.c.b16 %v621, %v619
        %v840 = vpack.c.b16 %v622, %v620
        %v841 = vpack.c.b16 %v625, %v623
        %v842 = vpack.c.b16 %v626, %v624
        %v843 = vpack.c.b16 %v629, %v627
        %v844 = vpack.c.b16 %v630, %v628
        %v845 = vpack.c.b16 %v633, %v631
        %v846 = vpack.c.b16 %v634, %v632
        %v847 = vpack.c.b16 %v637, %v635
        %v848 = vpack.c.b16 %v638, %v636
        %v849 = vpack.c.b16 %v641, %v639
        %v850 = vpack.c.b16 %v642, %v640
        %v851 = vpack.c.b16 %v645, %v643
        %v852 = vpack.c.b16 %v646, %v644
        %v853 = vpack.c.b16 %v649, %v647
        %v854 = vpack.c.b16 %v650, %v648
        %v855 = vpack.c.b16 %v653, %v651
        %v856 = vpack.c.b16 %v654, %v652
        %v857 = vpack.c.b16 %v657, %v655
        %v858 = vpack.c.b16 %v658, %v656
        %v859 = vpack.c.b16 %v661, %v659
        %v860 = vpack.c.b16 %v662, %v660
        %v861 = vpack.c.b16 %v665, %v663
        %v862 = vpack.c.b16 %v666, %v664
        %v863 = vpack.c.b16 %v669, %v667
        %v864 = vpack.c.b16 %v670, %v668
        %v865 = vpack.c.b16 %v673, %v671
        %v866 = vpack.c.b16 %v674, %v672
        %v867 = vpack.c.b16 %v677, %v675
        %v868 = vpack.c.b16 %v678, %v676
        %v869 = vpack.c.b16 %v681, %v679
        %v870 = vpack.c.b16 %v682, %v680
        %v871 = vpack.c.b16 %v685, %v683
        %v872 = vpack.c.b16 %v686, %v684
        %v873 = vpack.c.b16 %v689, %v687
        %v874 = vpack.c.b16 %v690, %v688
        %v875 = vpack.c.b16 %v693, %v691
        %v876 = vpack.c.b16 %v694, %v692
        %v877 = vpack.c.b16 %v697, %v695
        %v878 = vpack.c.b16 %v698, %v696
        %v879 = vpack.c.b16 %v701, %v699
        %v880 = vpack.c.b16 %v702, %v700
        %v881 = vpack.c.b16 %v705, %v703
        %v882 = vpack.c.b16 %v706, %v704
        %v883 = vpack.c.b16 %v709, %v707
        %v884 = vpack.c.b16 %v710, %v708
        %v885 = vpack.c.b16 %v713, %v711
        %v886 = vpack.c.b16 %v714, %v712
        %v887 = vpack.c.b16 %v717, %v715
        %v888 = vpack.c.b16 %v718, %v716
        %v889 = vpack.c.b16 %v721, %v719
        %v890 = vpack.c.b16 %v722, %v720
        %v891 = vpack.c.b16 %v725, %v723
        %v892 = vpack.c.b16 %v726, %v724
        %v893 = vpack.c.b16 %v729, %v727
        %v894 = vpack.c.b16 %v730, %v728
        %v895 = vpack.c.b16 %v733, %v731
        %v896 = vpack.c.b16 %v734, %v732
        %v897 = vpack.c.b16 %v737, %v735
        %v898 = vpack.c.b16 %v738, %v736
        %v899 = vpack.c.b16 %v741, %v739
        %v900 = vpack.c.b16 %v742, %v740
        %v901 = vpack.c.b16 %v745, %v743
        %v902 = vpack.c.b16 %v746, %v744
        %v903 = vpack.c.b16 %v749, %v747
        %v904 = vpack.c.b16 %v750, %v748
        %v905 = vpack.c.b16 %v753, %v751
        %v906 = vpack.c.b16 %v754, %v752
        %v907 = vpack.c.b16 %v757, %v755
        %v908 = vpack.c.b16 %v758, %v756
        %v909 = vpack.c.b16 %v761, %v759
        %v910 = vpack.c.b16 %v762, %v760
        %v911 = vpack.c.b16 %v765, %v763
        %v912 = vpack.c.b16 %v766, %v764
        %v913 = vpack.c.b16 %v769, %v767
        %v914 = vpack.c.b16 %v770, %v768
        %v915 = vpack.c.b16 %v773, %v771
        %v916 = vpack.c.b16 %v774, %v772
        %v917 = vpack.c.b16 %v777, %v775
        %v918 = vpack.c.b16 %v778, %v776
        %v919 = vpack.c.b16 %v781, %v779
        %v920 = vpack.c.b16 %v782, %v780
        %v921 = vpack.c.b16 %v785, %v783
        %v922 = vpack.c.b16 %v786, %v784
        %v923 = vpack.c.b16 %v789, %v787
        %v924 = vpack.c.b16 %v790, %v788
        %v925 = vpack.c.b16 %v793, %v791
        %v926 = vpack.c.b16 %v794, %v792
        %v927 = vpack.c.b16 %v797, %v795
        %v928 = vpack.c.b16 %v798, %v796
        %v929 = vpack.c.b16 %v801, %v799
        %v930 = vpack.c.b16 %v802, %v800
        %1059 = vmatprep.subr.bf16.mxu0 %v818
        %1060 = vmatpush1.bf16.msra.mxu0 %v817
        %1061 = vmatprep.subr.bf16.mxu0 %v816
        %1062 = vmatpush1.bf16.msra.mxu0 %v815
        %1063 = vmatprep.subr.bf16.mxu0 %v814
        %1064 = vmatpush1.bf16.msra.mxu0 %v813
        %1065 = vmatprep.subr.bf16.mxu0 %v812
        %1066 = vmatpush1.bf16.msra.mxu0 %v811
        %1067 = vmatprep.subr.bf16.mxu0 %v810
        %1068 = vmatpush1.bf16.msra.mxu0 %v809
        %1069 = vmatprep.subr.bf16.mxu0 %v808
        %1070 = vmatpush1.bf16.msra.mxu0 %v807
        %1071 = vmatprep.subr.bf16.mxu0 %v806
        %1072 = vmatpush1.bf16.msra.mxu0 %v805
        %1073 = vmatprep.subr.bf16.mxu0 %v804
        %1074 = vmatpush1.bf16.msra.mxu0 %v803
        %1075 = vmatprep.subr.bf16.mxu0 %v834
        %1076 = vmatpush2.bf16.msra.mxu0 %v833
        %1077 = vmatprep.subr.bf16.mxu0 %v832
        %1078 = vmatpush2.bf16.msra.mxu0 %v831
        %1079 = vmatprep.subr.bf16.mxu0 %v830
        %1080 = vmatpush2.bf16.msra.mxu0 %v829
        %1081 = vmatprep.subr.bf16.mxu0 %v828
        %1082 = vmatpush2.bf16.msra.mxu0 %v827
        %1083 = vmatprep.subr.bf16.mxu0 %v826
        %1084 = vmatpush2.bf16.msra.mxu0 %v825
        %1085 = vmatprep.subr.bf16.mxu0 %v824
        %1086 = vmatpush2.bf16.msra.mxu0 %v823
        %1087 = vmatprep.subr.bf16.mxu0 %v822
        %1088 = vmatpush2.bf16.msra.mxu0 %v821
        %1089 = vmatprep.subr.bf16.mxu0 %v820
        %1090 = vmatpush2.bf16.msra.mxu0 %v819
        %1091 = vmatprep.mubr.bf16.mxu0 %v404
        %1092 = vmatmul.mubr.bf16.gmra.mxu0 %v403
        %v1093 = vpop.f32.mrf.mxu0
        %v1094 = vadd.f32 0.0, %v1093
        %v1095 = vpop.f32.mrf.mxu0
        %v1096 = vadd.f32 0.0, %v1095
        %v1097 = vpop.f32.mrf.mxu0
        %v1098 = vpop.f32.mrf.mxu0
        %1099 = vdwg.mxu0
        %1100 = vmatprep.subr.bf16.mxu0 %v850
        %1101 = vmatpush1.bf16.msra.mxu0 %v849
        %1102 = vmatprep.subr.bf16.mxu0 %v848
        %1103 = vmatpush1.bf16.msra.mxu0 %v847
        %1104 = vmatprep.subr.bf16.mxu0 %v846
        %1105 = vmatpush1.bf16.msra.mxu0 %v845
        %1106 = vmatprep.subr.bf16.mxu0 %v844
        %1107 = vmatpush1.bf16.msra.mxu0 %v843
        %1108 = vmatprep.subr.bf16.mxu0 %v842
        %1109 = vmatpush1.bf16.msra.mxu0 %v841
        %1110 = vmatprep.subr.bf16.mxu0 %v840
        %1111 = vmatpush1.bf16.msra.mxu0 %v839
        %1112 = vmatprep.subr.bf16.mxu0 %v838
        %1113 = vmatpush1.bf16.msra.mxu0 %v837
        %1114 = vmatprep.subr.bf16.mxu0 %v836
        %1115 = vmatpush1.bf16.msra.mxu0 %v835
        %1116 = vmatprep.subr.bf16.mxu0 %v866
        %1117 = vmatpush2.bf16.msra.mxu0 %v865
        %1118 = vmatprep.subr.bf16.mxu0 %v864
        %1119 = vmatpush2.bf16.msra.mxu0 %v863
        %1120 = vmatprep.subr.bf16.mxu0 %v862
        %1121 = vmatpush2.bf16.msra.mxu0 %v861
        %1122 = vmatprep.subr.bf16.mxu0 %v860
        %1123 = vmatpush2.bf16.msra.mxu0 %v859
        %1124 = vmatprep.subr.bf16.mxu0 %v858
        %1125 = vmatpush2.bf16.msra.mxu0 %v857
        %1126 = vmatprep.subr.bf16.mxu0 %v856
        %1127 = vmatpush2.bf16.msra.mxu0 %v855
        %1128 = vmatprep.subr.bf16.mxu0 %v854
        %1129 = vmatpush2.bf16.msra.mxu0 %v853
        %1130 = vmatprep.subr.bf16.mxu0 %v852
        %1131 = vmatpush2.bf16.msra.mxu0 %v851
        %1132 = vmatprep.mubr.bf16.mxu0 %v406
        %1133 = vmatmul.mubr.bf16.gmra.mxu0 %v405
        %v1134 = vpop.f32.mrf.mxu0
        %v1135 = vadd.f32 %v1094, %v1134
        %v1136 = vpop.f32.mrf.mxu0
        %v1137 = vadd.f32 %v1096, %v1136
        %v1138 = vpop.f32.mrf.mxu0
        %v1139 = vpop.f32.mrf.mxu0
        %1140 = vdwg.mxu0
        %1141 = vmatprep.subr.bf16.mxu0 %v882
        %1142 = vmatpush1.bf16.msra.mxu0 %v881
        %1143 = vmatprep.subr.bf16.mxu0 %v880
        %1144 = vmatpush1.bf16.msra.mxu0 %v879
        %1145 = vmatprep.subr.bf16.mxu0 %v878
        %1146 = vmatpush1.bf16.msra.mxu0 %v877
        %1147 = vmatprep.subr.bf16.mxu0 %v876
        %1148 = vmatpush1.bf16.msra.mxu0 %v875
        %1149 = vmatprep.subr.bf16.mxu0 %v874
        %1150 = vmatpush1.bf16.msra.mxu0 %v873
        %1151 = vmatprep.subr.bf16.mxu0 %v872
        %1152 = vmatpush1.bf16.msra.mxu0 %v871
        %1153 = vmatprep.subr.bf16.mxu0 %v870
        %1154 = vmatpush1.bf16.msra.mxu0 %v869
        %1155 = vmatprep.subr.bf16.mxu0 %v868
        %1156 = vmatpush1.bf16.msra.mxu0 %v867
        %1157 = vmatprep.subr.bf16.mxu0 %v898
        %1158 = vmatpush2.bf16.msra.mxu0 %v897
        %1159 = vmatprep.subr.bf16.mxu0 %v896
        %1160 = vmatpush2.bf16.msra.mxu0 %v895
        %1161 = vmatprep.subr.bf16.mxu0 %v894
        %1162 = vmatpush2.bf16.msra.mxu0 %v893
        %1163 = vmatprep.subr.bf16.mxu0 %v892
        %1164 = vmatpush2.bf16.msra.mxu0 %v891
        %1165 = vmatprep.subr.bf16.mxu0 %v890
        %1166 = vmatpush2.bf16.msra.mxu0 %v889
        %1167 = vmatprep.subr.bf16.mxu0 %v888
        %1168 = vmatpush2.bf16.msra.mxu0 %v887
        %1169 = vmatprep.subr.bf16.mxu0 %v886
        %1170 = vmatpush2.bf16.msra.mxu0 %v885
        %1171 = vmatprep.subr.bf16.mxu0 %v884
        %1172 = vmatpush2.bf16.msra.mxu0 %v883
        %1173 = vmatprep.mubr.bf16.mxu0 %v408
        %1174 = vmatmul.mubr.bf16.gmra.mxu0 %v407
        %v1175 = vpop.f32.mrf.mxu0
        %v1176 = vadd.f32 %v1135, %v1175
        %v1177 = vpop.f32.mrf.mxu0
        %v1178 = vadd.f32 %v1137, %v1177
        %v1179 = vpop.f32.mrf.mxu0
        %v1180 = vpop.f32.mrf.mxu0
        %1181 = vdwg.mxu0
        %1182 = vmatprep.subr.bf16.mxu0 %v914
        %1183 = vmatpush1.bf16.msra.mxu0 %v913
        %1184 = vmatprep.subr.bf16.mxu0 %v912
        %1185 = vmatpush1.bf16.msra.mxu0 %v911
        %1186 = vmatprep.subr.bf16.mxu0 %v910
        %1187 = vmatpush1.bf16.msra.mxu0 %v909
        %1188 = vmatprep.subr.bf16.mxu0 %v908
        %1189 = vmatpush1.bf16.msra.mxu0 %v907
        %1190 = vmatprep.subr.bf16.mxu0 %v906
        %1191 = vmatpush1.bf16.msra.mxu0 %v905
        %1192 = vmatprep.subr.bf16.mxu0 %v904
        %1193 = vmatpush1.bf16.msra.mxu0 %v903
        %1194 = vmatprep.subr.bf16.mxu0 %v902
        %1195 = vmatpush1.bf16.msra.mxu0 %v901
        %1196 = vmatprep.subr.bf16.mxu0 %v900
        %1197 = vmatpush1.bf16.msra.mxu0 %v899
        %1198 = vmatprep.subr.bf16.mxu0 %v930
        %1199 = vmatpush2.bf16.msra.mxu0 %v929
        %1200 = vmatprep.subr.bf16.mxu0 %v928
        %1201 = vmatpush2.bf16.msra.mxu0 %v927
        %1202 = vmatprep.subr.bf16.mxu0 %v926
        %1203 = vmatpush2.bf16.msra.mxu0 %v925
        %1204 = vmatprep.subr.bf16.mxu0 %v924
        %1205 = vmatpush2.bf16.msra.mxu0 %v923
        %1206 = vmatprep.subr.bf16.mxu0 %v922
        %1207 = vmatpush2.bf16.msra.mxu0 %v921
        %1208 = vmatprep.subr.bf16.mxu0 %v920
        %1209 = vmatpush2.bf16.msra.mxu0 %v919
        %1210 = vmatprep.subr.bf16.mxu0 %v918
        %1211 = vmatpush2.bf16.msra.mxu0 %v917
        %1212 = vmatprep.subr.bf16.mxu0 %v916
        %1213 = vmatpush2.bf16.msra.mxu0 %v915
        %1214 = vmatprep.mubr.bf16.mxu0 %v410
        %1215 = vmatmul.mubr.bf16.gmra.mxu0 %v409
        %v1216 = vpop.f32.mrf.mxu0
        %v1217 = vadd.f32 %v1176, %v1216
        %v1218 = vpop.f32.mrf.mxu0
        %v1219 = vadd.f32 %v1178, %v1218
        %v1220 = vpop.f32.mrf.mxu0
        %v1221 = vpop.f32.mrf.mxu0
        %1222 = vdwg.mxu0
        %v1223 = vadd.f32 %v257, %v1217
        %v1224 = vadd.f32 %v258, %v1219
        %1225 = vst [vmem:[#allocation2] sm:$0xff] %v1223
        %1226 = vst [vmem:[#allocation2 + $0x8] sm:$0xff] %v1224
        %p1227 = scmp.eq.s32.totalorder %s26, 2
        // Predicated region
        $region49: #{tpu_custom_call.1} parent=31 // pred_check
          %p1228 = pneg %p1227
        $region50: #{tpu_custom_call.1} parent=31 // pred_check_branch
          %1230 = sbr.rel (%p1228) target = $region52
        $region51: #{tpu_custom_call.1} parent=31 // pred_region
          %v1231 = vld [vmem:[#allocation2] sm:$0xff]
          %v1232 = vld [vmem:[#allocation2 + $0x8] sm:$0xff]
          %v1233 = vld [vmem:[#allocation8] sm:$0x3]
          %v1235 = vlaneseq
          %v1236 = vshrl.u32 %v1235, 7
          %v1237 = vsub.s32 0, %v1236
          %v1238 = vrot.slane %v1233, %v1237
          %v1239 = vlaneseq
          %v1240 = vshrl.u32 %v1239, 7
          %v1241 = vsub.s32 1, %v1240
          %v1242 = vrot.slane %v1233, %v1241
          %v1245 = vadd.f32 %v1231, %v1238
          %v1246 = vadd.f32 %v1232, %v1242
          %v1247 = vmax.f32 %v1245, 0.0
          %v1248 = vmax.f32 %v1246, 0.0
          %1249 = vst [vmem:[#allocation9] sm:$0xff] %v1247
          %1250 = vst [vmem:[#allocation9 + $0x8] sm:$0xff] %v1248
        $region52: #{tpu_custom_call.1} parent=31 // pred_fallthru
          _
        // Predicated region
        $region53: #{tpu_custom_call.1} parent=31 // pred_check
          %p1251 = pneg %p126
        $region54: #{tpu_custom_call.1} parent=31 // pred_check_branch
          %1253 = sbr.rel (%p1251) target = $region56
        $region55: #{tpu_custom_call.1} parent=31 // pred_region
          %s1255 = ssub.s32 256, 256
          %1256 = vsyncadd [#allocation5], %s1255
          %s1257 = smul.addr %s25, 2
          %s1258 = smul.addr %s1257, 128
          %s1259 = scalar_lea.hbm %s3, %s1258
          %s1261 = sshll.u32 [#allocation9], 4
          %s1262 = int_to_ptr.vmem [resolvable:$true] %s1261
          %1264 = dma.vmem_to_hbm [thread:$0]  %s1262, 256, %s1259, [#allocation5]
        $region56: #{tpu_custom_call.1} parent=31 // pred_fallthru
          _
        // Predicated region
        $region57: #{tpu_custom_call.1} parent=31 // pred_check
          %p1265 = pneg %p126
        $region58: #{tpu_custom_call.1} parent=31 // pred_check_branch
          %1267 = sbr.rel (%p1265) target = $region60
        $region59: #{tpu_custom_call.1} parent=31 // pred_region
          %1268 = dma.done [#allocation5], 256
        $region60: #{tpu_custom_call.1} parent=31 // pred_fallthru
          _
      $region32: #{tpu_custom_call.1} parent=5 // pred_fallthru
        _
      %p1269 = scmp.le.s32.totalorder 2, %s16
      // Predicated region
      $region61: #{tpu_custom_call.1} parent=5 // pred_check
        %p1270 = pneg %p1269
      $region62: #{tpu_custom_call.1} parent=5 // pred_check_branch
        %1272 = sbr.rel (%p1270) target = $region64
      $region63: #{tpu_custom_call.1} parent=5 // pred_region
        %s1273 = ssub.s32 %s16, 2
      $region64: #{tpu_custom_call.1} parent=5 // pred_fallthru
        _
    $region6: #{tpu_custom_call.1} parent=1 // loop_footer
      %s20 = sadd.s32 1, %s16
    $region7: #{tpu_custom_call.1} parent=1 // loop_footer_branch
      %15 = sbr.rel target = $region3
    $region8: #{tpu_custom_call.1} parent=1 // loop_exit
      _
    %1274 = vsyncpa [#allocation4], 1
    %s1275 = scalar_lea.sflag [#allocation4], 1
    %1276 = vsyncpa %s1275, 1
    %1277 = vsyncpa [#allocation7], 1
    %s1278 = scalar_lea.sflag [#allocation7], 1
    %1279 = vsyncpa %s1278, 1
    %1280 = vsyncpa [#allocation5], 1
    %s1281 = scalar_lea.sflag [#allocation5], 1
    %1282 = vsyncpa %s1281, 1

</llo_original>
